<compile_context>
chip_gen: v5e
topology: v5e:2x2
jax: 0.10.0
libtpu: 0.0.40
codegen_flags: <defaults>
</compile_context>

<pallas_src>
import functools

import jax
import jax.numpy as jnp
from jax.experimental import pallas as pl
from jax.experimental.pallas import tpu as pltpu


def _round_up(x, m):
    return ((x + m - 1) // m) * m


def mlp_kernel(x_ref, w1_ref, b1_ref, w2t_ref, b2_ref, o_ref):
    # Hidden pre-activation: (tile, H_pad) on the MXU (K = F is tiny; Mosaic masks it).
    z = jnp.dot(x_ref[...], w1_ref[...], preferred_element_type=jnp.float32)
    z = z + b1_ref[...]
    # sigmoid(z) = 1 / (1 + exp(-z)); exp and the approximate reciprocal both run
    # on the EUP slot, keeping the VALU free.
    h = pl.reciprocal(1.0 + jnp.exp(-z), approx=True)            # (tile, H_pad)
    # Second layer computed transposed: (O_pad, H_pad) x (tile, H_pad)^T -> (O_pad, tile)
    # so the batch dim is lane-dense in the output block (unmasked full-lane store).
    y = jax.lax.dot_general(
        w2t_ref[...], h,
        dimension_numbers=(((1,), (1,)), ((), ())),
        preferred_element_type=jnp.float32)
    o_ref[...] = (y + b2_ref[...]).astype(o_ref.dtype)


def prepare_params(w1, b1, w2, b2):
    """One-time packing/padding of Net params (hoisted out of the per-call path).

    w1: (F, H), b1: (1, H), w2: (H, O), b2: (1, O)  ->
      w1_p:  (F, H_pad)       H padded to a 128-lane multiple
      b1_p:  (1, H_pad)
      w2t_p: (O_pad8, H_pad)  W2 transposed, O padded to the 8-sublane minimum
      b2_p:  (O_pad8, 1)
    Zero padding is numerically exact: padded hidden lanes give sigmoid(0)=0.5 but
    hit zero columns of W2^T; padded output rows are zero and sliced off outside.
    """
    F, H = w1.shape
    O = w2.shape[1]
    H_pad = _round_up(H, 128)
    O_pad = _round_up(O, 8)
    w1_p = jnp.zeros((F, H_pad), jnp.float32).at[:, :H].set(w1)
    b1_p = jnp.zeros((1, H_pad), jnp.float32).at[:, :H].set(b1.reshape(1, H))
    w2t_p = jnp.zeros((O_pad, H_pad), jnp.float32).at[:O, :H].set(w2.T)
    b2_p = jnp.zeros((O_pad, 1), jnp.float32).at[:O, :].set(b2.reshape(O, 1))
    return w1_p, b1_p, w2t_p, b2_p


@functools.partial(jax.jit, static_argnames=("n_output", "tile_b"))
def net_forward(x, w1_p, b1_p, w2t_p, b2_p, *, n_output, tile_b=1024):
    """x: (B, F) float32; packed params from prepare_params.  Returns (B, n_output)."""
    x = x.astype(jnp.float32)
    B, F = x.shape
    O_pad, H_pad = w2t_p.shape

    # Batch tiling: biggest tile up to tile_b (VMEM cost per row is tiny); batch is
    # only padded when it is not a multiple of the tile (no x copy in the common case).
    tile = min(_round_up(tile_b, 8), _round_up(B, 8))
    B_pad = _round_up(B, tile)
    if B_pad != B:
        x = jnp.zeros((B_pad, F), jnp.float32).at[:B, :].set(x)

    grid = (B_pad // tile,)

    cost = pl.CostEstimate(
        flops=2 * B_pad * H_pad * (F + O_pad),
        transcendentals=2 * B_pad * H_pad,        # exp + reciprocal per hidden element
        bytes_accessed=4 * (B_pad * F + F * H_pad + H_pad
                            + O_pad * H_pad + O_pad + O_pad * B_pad),
    )

    out_p = pl.pallas_call(
        mlp_kernel,
        out_shape=jax.ShapeDtypeStruct((O_pad, B_pad), jnp.float32),
        grid=grid,
        in_specs=[
            pl.BlockSpec((tile, F), lambda i: (i, 0)),       # x: streamed per batch tile
            pl.BlockSpec((F, H_pad), lambda i: (0, 0)),      # W1: VMEM-resident
            pl.BlockSpec((1, H_pad), lambda i: (0, 0)),      # b1: VMEM-resident
            pl.BlockSpec((O_pad, H_pad), lambda i: (0, 0)),  # W2^T: VMEM-resident
            pl.BlockSpec((O_pad, 1), lambda i: (0, 0)),      # b2: VMEM-resident
        ],
        out_specs=pl.BlockSpec((O_pad, tile), lambda i: (0, i)),
        compiler_params=pltpu.CompilerParams(
            dimension_semantics=("parallel",),               # megacore split on v7x
        ),
        cost_estimate=cost,
    )(x, w1_p, b1_p, w2t_p, b2_p)

    # Drop output-row padding and transpose back to (B, n_output).
    return out_p[:n_output, :B].T


def init_params(key, n_feature, n_hidden, n_output):
    # Deterministic init mimicking torch.nn.Linear's U(-1/sqrt(fan_in), 1/sqrt(fan_in)).
    k1, k2, k3, k4 = jax.random.split(key, 4)
    bound1 = 1.0 / jnp.sqrt(n_feature)
    bound2 = 1.0 / jnp.sqrt(n_hidden)
    # stored as (in, out) == transpose of PyTorch's (out, in) weight layout
    w1 = jax.random.uniform(k1, (n_feature, n_hidden), jnp.float32, -bound1, bound1)
    b1 = jax.random.uniform(k2, (1, n_hidden), jnp.float32, -bound1, bound1)
    w2 = jax.random.uniform(k3, (n_hidden, n_output), jnp.float32, -bound2, bound2)
    b2 = jax.random.uniform(k4, (1, n_output), jnp.float32, -bound2, bound2)
    return w1, b1, w2, b2


if __name__ == "__main__":
    n_feature, n_hidden, n_output = 4, 11, 1   # n_hidden = 11 per the module's script
    batch = 256

    key = jax.random.PRNGKey(0)
    kx, kp = jax.random.split(key)
    x = jax.random.normal(kx, (batch, n_feature), jnp.float32)
    w1, b1, w2, b2 = init_params(kp, n_feature, n_hidden, n_output)

    # Pack / pad params ONCE, outside the per-call hot path.
    w1_p, b1_p, w2t_p, b2_p = prepare_params(w1, b1, w2, b2)

    out = net_forward(x, w1_p, b1_p, w2t_p, b2_p, n_output=n_output)
    out = jax.block_until_ready(out)

    # Reference in plain JAX.  Tolerance is 5e-3 because the kernel uses the EUP
    # approximate reciprocal inside the sigmoid (~1e-4 relative); genuine bugs
    # (wrong weights / layout / masking) would show up as O(0.1) errors.
    ref = jax.nn.sigmoid(x @ w1 + b1) @ w2 + b2
    assert out.shape == (batch, n_output)
    assert jnp.allclose(out, ref, atol=5e-3, rtol=5e-3)

    print("KERNEL_OK")
</pallas_src>

<mosaic_0001>
module attributes {stable_mosaic.version = 11 : i64} {
  func.func @mlp_kernel(%arg0: i32, %arg1: memref<256x4xf32, #tpu.memory_space<vmem>>, %arg2: memref<4x128xf32, #tpu.memory_space<vmem>>, %arg3: memref<1x128xf32, #tpu.memory_space<vmem>>, %arg4: memref<8x128xf32, #tpu.memory_space<vmem>>, %arg5: memref<8x1xf32, #tpu.memory_space<vmem>>, %arg6: memref<8x256xf32, #tpu.memory_space<vmem>>) attributes {dimension_semantics = [#tpu.dimension_semantics<parallel>], iteration_bounds = array<i64: 1>, scalar_prefetch = 0 : i64, scratch_operands = 0 : i64, tpu.core_type = #tpu.core_type<tc>, window_params = [{transform_indices = @transform_0, window_bounds = array<i64: 256, 4>}, {pipeline_mode = #tpu.pipeline_mode<synchronous>, transform_indices = @transform_1, window_bounds = array<i64: 4, 128>}, {pipeline_mode = #tpu.pipeline_mode<synchronous>, transform_indices = @transform_2, window_bounds = array<i64: 1, 128>}, {pipeline_mode = #tpu.pipeline_mode<synchronous>, transform_indices = @transform_3, window_bounds = array<i64: 8, 128>}, {pipeline_mode = #tpu.pipeline_mode<synchronous>, transform_indices = @transform_4, window_bounds = array<i64: 8, 1>}, {transform_indices = @transform_5, window_bounds = array<i64: 8, 256>}]} {
    %c0 = arith.constant 0 : index
    %c0_0 = arith.constant 0 : index
    %0 = vector.load %arg1[%c0, %c0_0] : memref<256x4xf32, #tpu.memory_space<vmem>>, vector<256x4xf32>
    %c0_1 = arith.constant 0 : index
    %c0_2 = arith.constant 0 : index
    %1 = vector.load %arg2[%c0_1, %c0_2] : memref<4x128xf32, #tpu.memory_space<vmem>>, vector<4x128xf32>
    %cst = arith.constant dense<0.000000e+00> : vector<256x128xf32>
    %2 = tpu.matmul %0, %1, %cst {dimension_numbers = #tpu.dot_dimension_numbers<[1], [0], [0], [1], [0, 0, 1, 1], [], []>} : vector<256x4xf32>, vector<4x128xf32>, vector<256x128xf32> -> vector<256x128xf32>
    %c0_3 = arith.constant 0 : index
    %c0_4 = arith.constant 0 : index
    %3 = vector.load %arg3[%c0_3, %c0_4] : memref<1x128xf32, #tpu.memory_space<vmem>>, vector<1x128xf32>
    %4 = vector.broadcast %3 : vector<1x128xf32> to vector<256x128xf32>
    %5 = arith.addf %2, %4 : vector<256x128xf32>
    %cst_5 = arith.constant 0.000000e+00 : f32
    %6 = vector.broadcast %cst_5 : f32 to vector<256x128xf32>
    %7 = arith.subf %6, %5 : vector<256x128xf32>
    %8 = math.exp %7 : vector<256x128xf32>
    %cst_6 = arith.constant 1.000000e+00 : f32
    %9 = vector.broadcast %cst_6 : f32 to vector<256x128xf32>
    %10 = arith.addf %9, %8 : vector<256x128xf32>
    %11 = tpu.reciprocal %10 {approx = true} : vector<256x128xf32> -> vector<256x128xf32>
    %c0_7 = arith.constant 0 : index
    %c0_8 = arith.constant 0 : index
    %12 = vector.load %arg4[%c0_7, %c0_8] : memref<8x128xf32, #tpu.memory_space<vmem>>, vector<8x128xf32>
    %cst_9 = arith.constant dense<0.000000e+00> : vector<8x256xf32>
    %13 = tpu.matmul %12, %11, %cst_9 {dimension_numbers = #tpu.dot_dimension_numbers<[1], [1], [0], [0], [0, 0, 1, 0], [], []>} : vector<8x128xf32>, vector<256x128xf32>, vector<8x256xf32> -> vector<8x256xf32>
    %c0_10 = arith.constant 0 : index
    %c0_11 = arith.constant 0 : index
    %14 = vector.load %arg5[%c0_10, %c0_11] : memref<8x1xf32, #tpu.memory_space<vmem>>, vector<8x1xf32>
    %15 = vector.broadcast %14 : vector<8x1xf32> to vector<8x256xf32>
    %16 = arith.addf %13, %15 : vector<8x256xf32>
    %c0_12 = arith.constant 0 : index
    %c0_13 = arith.constant 0 : index
    %17 = vector.load %arg6[%c0_12, %c0_13] : memref<8x256xf32, #tpu.memory_space<vmem>>, vector<8x256xf32>
    tpu.vector_store %arg6[%c0_12, %c0_13], %16 {strides = array<i32>} : memref<8x256xf32, #tpu.memory_space<vmem>>, vector<8x256xf32>,
    return
  }
  func.func @transform_0(%arg0: i32) -> (i32, i32) {
    %c0_i32 = arith.constant 0 : i32
    %c0_i32_0 = arith.constant 0 : i32
    return %arg0, %c0_i32 : i32, i32
  }
  func.func @transform_1(%arg0: i32) -> (i32, i32) {
    %c0_i32 = arith.constant 0 : i32
    %c0_i32_0 = arith.constant 0 : i32
    %c0_i32_1 = arith.constant 0 : i32
    return %c0_i32, %c0_i32_0 : i32, i32
  }
  func.func @transform_2(%arg0: i32) -> (i32, i32) {
    %c0_i32 = arith.constant 0 : i32
    %c0_i32_0 = arith.constant 0 : i32
    %c0_i32_1 = arith.constant 0 : i32
    return %c0_i32, %c0_i32_0 : i32, i32
  }
  func.func @transform_3(%arg0: i32) -> (i32, i32) {
    %c0_i32 = arith.constant 0 : i32
    %c0_i32_0 = arith.constant 0 : i32
    %c0_i32_1 = arith.constant 0 : i32
    return %c0_i32, %c0_i32_0 : i32, i32
  }
  func.func @transform_4(%arg0: i32) -> (i32, i32) {
    %c0_i32 = arith.constant 0 : i32
    %c0_i32_0 = arith.constant 0 : i32
    %c0_i32_1 = arith.constant 0 : i32
    return %c0_i32, %c0_i32_0 : i32, i32
  }
  func.func @transform_5(%arg0: i32) -> (i32, i32) {
    %c0_i32 = arith.constant 0 : i32
    %c0_i32_0 = arith.constant 0 : i32
    return %c0_i32, %arg0 : i32, i32
  }
}

</mosaic_0001>

<llo_original>
// kernel: net_forward.1
$region0: #{net_forward.1}
  #allocation0 [shape = 'u32[]', space=smem, size = 0x4, offset = 0x4, fixed_abs, tag = 'smem constant byte address 0x4 - core index']
  #allocation1 [shape = 'u32[72,128]{1,0:T(1,128)}', space=vmem, size = 0x9000, scoped, tag = 'internal scratch']
  %s0 = inlined_call_operand.vmem [shape: f32[256,4], index: 0, kind: input, shape index: {}]
  %s1 = inlined_call_operand.vmem [shape: f32[4,128], index: 1, kind: input, shape index: {}]
  %s2 = inlined_call_operand.vmem [shape: f32[1,128], index: 2, kind: input, shape index: {}]
  %s3 = inlined_call_operand.vmem [shape: f32[8,128], index: 3, kind: input, shape index: {}]
  %s4 = inlined_call_operand.vmem [shape: f32[8,1], index: 4, kind: input, shape index: {}]
  %s5 = inlined_call_operand.vmem [shape: f32[8,256], index: 5, kind: output, shape index: {}]
  %s6 = sld [smem:[#allocation0]]
  $region30: #{net_forward.1} parent=0
    _
  %s8 = ssub.s32 1, %s6
  %s9 = scalar_select 0, %s8, %s6
  // Predicated region
  $region2: #{net_forward.1} parent=0 // pred_check
    _
  $region3: #{net_forward.1} parent=0 // pred_check_branch
    %11 = sbr.rel (0) target = $region5
  $region4: #{net_forward.1} parent=0 // pred_region
    _
  $region5: #{net_forward.1} parent=0 // pred_fallthru
    _
  // Predicated region
  $region6: #{net_forward.1} parent=0 // pred_check
    _
  $region7: #{net_forward.1} parent=0 // pred_check_branch
    %13 = sbr.rel (0) target = $region9
  $region8: #{net_forward.1} parent=0 // pred_region
    _
  $region9: #{net_forward.1} parent=0 // pred_fallthru
    _
  // Predicated region
  $region10: #{net_forward.1} parent=0 // pred_check
    _
  $region11: #{net_forward.1} parent=0 // pred_check_branch
    %15 = sbr.rel (0) target = $region13
  $region12: #{net_forward.1} parent=0 // pred_region
    _
  $region13: #{net_forward.1} parent=0 // pred_fallthru
    _
  // Predicated region
  $region14: #{net_forward.1} parent=0 // pred_check
    _
  $region15: #{net_forward.1} parent=0 // pred_check_branch
    %17 = sbr.rel (0) target = $region17
  $region16: #{net_forward.1} parent=0 // pred_region
    _
  $region17: #{net_forward.1} parent=0 // pred_fallthru
    _
  // Predicated region
  $region18: #{net_forward.1} parent=0 // pred_check
    _
  $region19: #{net_forward.1} parent=0 // pred_check_branch
    %19 = sbr.rel (0) target = $region21
  $region20: #{net_forward.1} parent=0 // pred_region
    _
  $region21: #{net_forward.1} parent=0 // pred_fallthru
    _
  %v20 = vld [vmem:[%s0] sm:$0xff]
  %v21 = vld [vmem:[%s0 + $0x8] sm:$0xff]
  %v22 = vld [vmem:[%s0 + $0x10] sm:$0xff]
  %v23 = vld [vmem:[%s0 + $0x18] sm:$0xff]
  %v24 = vld [vmem:[%s0 + $0x20] sm:$0xff]
  %v25 = vld [vmem:[%s0 + $0x28] sm:$0xff]
  %v26 = vld [vmem:[%s0 + $0x30] sm:$0xff]
  %v27 = vld [vmem:[%s0 + $0x38] sm:$0xff]
  %v28 = vld [vmem:[%s0 + $0x40] sm:$0xff]
  %v29 = vld [vmem:[%s0 + $0x48] sm:$0xff]
  %v30 = vld [vmem:[%s0 + $0x50] sm:$0xff]
  %v31 = vld [vmem:[%s0 + $0x58] sm:$0xff]
  %v32 = vld [vmem:[%s0 + $0x60] sm:$0xff]
  %v33 = vld [vmem:[%s0 + $0x68] sm:$0xff]
  %v34 = vld [vmem:[%s0 + $0x70] sm:$0xff]
  %v35 = vld [vmem:[%s0 + $0x78] sm:$0xff]
  %v36 = vld [vmem:[%s0 + $0x80] sm:$0xff]
  %v37 = vld [vmem:[%s0 + $0x88] sm:$0xff]
  %v38 = vld [vmem:[%s0 + $0x90] sm:$0xff]
  %v39 = vld [vmem:[%s0 + $0x98] sm:$0xff]
  %v40 = vld [vmem:[%s0 + $0xa0] sm:$0xff]
  %v41 = vld [vmem:[%s0 + $0xa8] sm:$0xff]
  %v42 = vld [vmem:[%s0 + $0xb0] sm:$0xff]
  %v43 = vld [vmem:[%s0 + $0xb8] sm:$0xff]
  %v44 = vld [vmem:[%s0 + $0xc0] sm:$0xff]
  %v45 = vld [vmem:[%s0 + $0xc8] sm:$0xff]
  %v46 = vld [vmem:[%s0 + $0xd0] sm:$0xff]
  %v47 = vld [vmem:[%s0 + $0xd8] sm:$0xff]
  %v48 = vld [vmem:[%s0 + $0xe0] sm:$0xff]
  %v49 = vld [vmem:[%s0 + $0xe8] sm:$0xff]
  %v50 = vld [vmem:[%s0 + $0xf0] sm:$0xff]
  %v51 = vld [vmem:[%s0 + $0xf8] sm:$0xff]
  %v52 = vld [vmem:[%s1] sm:$0xf]
  %v53 = vld [vmem:[%s2] sm:$0x1]
  %v55 = vperm.slane %v53, 0
  %vm57 = vcmask 31744
  %v59 = vsel %vm57, %v20, 0
  %v62 = vsel %vm57, %v21, 0
  %v65 = vsel %vm57, %v22, 0
  %v68 = vsel %vm57, %v23, 0
  %v71 = vsel %vm57, %v24, 0
  %v74 = vsel %vm57, %v25, 0
  %v77 = vsel %vm57, %v26, 0
  %v80 = vsel %vm57, %v27, 0
  %v83 = vsel %vm57, %v28, 0
  %v86 = vsel %vm57, %v29, 0
  %v89 = vsel %vm57, %v30, 0
  %v92 = vsel %vm57, %v31, 0
  %v95 = vsel %vm57, %v32, 0
  %v98 = vsel %vm57, %v33, 0
  %v101 = vsel %vm57, %v34, 0
  %v104 = vsel %vm57, %v35, 0
  %v107 = vsel %vm57, %v36, 0
  %v110 = vsel %vm57, %v37, 0
  %v113 = vsel %vm57, %v38, 0
  %v116 = vsel %vm57, %v39, 0
  %v119 = vsel %vm57, %v40, 0
  %v122 = vsel %vm57, %v41, 0
  %v125 = vsel %vm57, %v42, 0
  %v128 = vsel %vm57, %v43, 0
  %v131 = vsel %vm57, %v44, 0
  %v134 = vsel %vm57, %v45, 0
  %v137 = vsel %vm57, %v46, 0
  %v140 = vsel %vm57, %v47, 0
  %v143 = vsel %vm57, %v48, 0
  %v146 = vsel %vm57, %v49, 0
  %v149 = vsel %vm57, %v50, 0
  %v152 = vsel %vm57, %v51, 0
  %vm154 = vcmask 1043456
  %v156 = vsel %vm154, %v52, 0
  %158 = vmatpush.msra.mxu0 0.0
  %159 = vmatpush.msra.mxu0 0.0
  %160 = vmatpush.msra.mxu0 0.0
  %161 = vmatpush.msra.mxu0 0.0
  %162 = vmatpush.msra.mxu0 0.0
  %163 = vmatpush.msra.mxu0 0.0
  %164 = vmatpush.msra.mxu0 0.0
  %165 = vmatpush.msra.mxu0 0.0
  %166 = vmatpush.msra.mxu0 0.0
  %167 = vmatpush.msra.mxu0 0.0
  %168 = vmatpush.msra.mxu0 0.0
  %169 = vmatpush.msra.mxu0 0.0
  %170 = vmatpush.msra.mxu0 0.0
  %171 = vmatpush.msra.mxu0 0.0
  %172 = vmatpush.msra.mxu0 0.0
  %173 = vmatpush.msra.mxu0 %v156
  %174 = vmatmul.f32.gmra.mxu0 %v59
  %v175 = vpop.f32.mrf.mxu0
  %v176 = vadd.f32 %v55, %v175
  %177 = vmatmul.f32.gmra.mxu0 %v62
  %v178 = vpop.f32.mrf.mxu0
  %v179 = vadd.f32 %v55, %v178
  %180 = vmatmul.f32.gmra.mxu0 %v65
  %v181 = vpop.f32.mrf.mxu0
  %v182 = vadd.f32 %v55, %v181
  %183 = vmatmul.f32.gmra.mxu0 %v68
  %v184 = vpop.f32.mrf.mxu0
  %v185 = vadd.f32 %v55, %v184
  %186 = vmatmul.f32.gmra.mxu0 %v71
  %v187 = vpop.f32.mrf.mxu0
  %v188 = vadd.f32 %v55, %v187
  %189 = vmatmul.f32.gmra.mxu0 %v74
  %v190 = vpop.f32.mrf.mxu0
  %v191 = vadd.f32 %v55, %v190
  %192 = vmatmul.f32.gmra.mxu0 %v77
  %v193 = vpop.f32.mrf.mxu0
  %v194 = vadd.f32 %v55, %v193
  %195 = vmatmul.f32.gmra.mxu0 %v80
  %v196 = vpop.f32.mrf.mxu0
  %v197 = vadd.f32 %v55, %v196
  %198 = vmatmul.f32.gmra.mxu0 %v83
  %v199 = vpop.f32.mrf.mxu0
  %v200 = vadd.f32 %v55, %v199
  %201 = vmatmul.f32.gmra.mxu0 %v86
  %v202 = vpop.f32.mrf.mxu0
  %v203 = vadd.f32 %v55, %v202
  %204 = vmatmul.f32.gmra.mxu0 %v89
  %v205 = vpop.f32.mrf.mxu0
  %v206 = vadd.f32 %v55, %v205
  %207 = vmatmul.f32.gmra.mxu0 %v92
  %v208 = vpop.f32.mrf.mxu0
  %v209 = vadd.f32 %v55, %v208
  %210 = vmatmul.f32.gmra.mxu0 %v95
  %v211 = vpop.f32.mrf.mxu0
  %v212 = vadd.f32 %v55, %v211
  %213 = vmatmul.f32.gmra.mxu0 %v98
  %v214 = vpop.f32.mrf.mxu0
  %v215 = vadd.f32 %v55, %v214
  %216 = vmatmul.f32.gmra.mxu0 %v101
  %v217 = vpop.f32.mrf.mxu0
  %v218 = vadd.f32 %v55, %v217
  %219 = vmatmul.f32.gmra.mxu0 %v104
  %v220 = vpop.f32.mrf.mxu0
  %v221 = vadd.f32 %v55, %v220
  %222 = vmatmul.f32.gmra.mxu0 %v107
  %v223 = vpop.f32.mrf.mxu0
  %v224 = vadd.f32 %v55, %v223
  %225 = vmatmul.f32.gmra.mxu0 %v110
  %v226 = vpop.f32.mrf.mxu0
  %v227 = vadd.f32 %v55, %v226
  %228 = vmatmul.f32.gmra.mxu0 %v113
  %v229 = vpop.f32.mrf.mxu0
  %v230 = vadd.f32 %v55, %v229
  %231 = vmatmul.f32.gmra.mxu0 %v116
  %v232 = vpop.f32.mrf.mxu0
  %v233 = vadd.f32 %v55, %v232
  %234 = vmatmul.f32.gmra.mxu0 %v119
  %v235 = vpop.f32.mrf.mxu0
  %v236 = vadd.f32 %v55, %v235
  %237 = vmatmul.f32.gmra.mxu0 %v122
  %v238 = vpop.f32.mrf.mxu0
  %v239 = vadd.f32 %v55, %v238
  %240 = vmatmul.f32.gmra.mxu0 %v125
  %v241 = vpop.f32.mrf.mxu0
  %v242 = vadd.f32 %v55, %v241
  %243 = vmatmul.f32.gmra.mxu0 %v128
  %v244 = vpop.f32.mrf.mxu0
  %v245 = vadd.f32 %v55, %v244
  %246 = vmatmul.f32.gmra.mxu0 %v131
  %v247 = vpop.f32.mrf.mxu0
  %v248 = vadd.f32 %v55, %v247
  %249 = vmatmul.f32.gmra.mxu0 %v134
  %v250 = vpop.f32.mrf.mxu0
  %v251 = vadd.f32 %v55, %v250
  %252 = vmatmul.f32.gmra.mxu0 %v137
  %v253 = vpop.f32.mrf.mxu0
  %v254 = vadd.f32 %v55, %v253
  %255 = vmatmul.f32.gmra.mxu0 %v140
  %v256 = vpop.f32.mrf.mxu0
  %v257 = vadd.f32 %v55, %v256
  %258 = vmatmul.f32.gmra.mxu0 %v143
  %v259 = vpop.f32.mrf.mxu0
  %v260 = vadd.f32 %v55, %v259
  %261 = vmatmul.f32.gmra.mxu0 %v146
  %v262 = vpop.f32.mrf.mxu0
  %v263 = vadd.f32 %v55, %v262
  %264 = vmatmul.f32.gmra.mxu0 %v149
  %v265 = vpop.f32.mrf.mxu0
  %v266 = vadd.f32 %v55, %v265
  %267 = vmatmul.f32.gmra.mxu0 %v152
  %v268 = vpop.f32.mrf.mxu0
  %v269 = vadd.f32 %v55, %v268
  %270 = vdwg.mxu0
  %v271 = vsub.f32 0.0, %v176
  %v272 = vsub.f32 0.0, %v179
  %v273 = vsub.f32 0.0, %v182
  %v274 = vsub.f32 0.0, %v185
  %v275 = vsub.f32 0.0, %v188
  %v276 = vsub.f32 0.0, %v191
  %v277 = vsub.f32 0.0, %v194
  %v278 = vsub.f32 0.0, %v197
  %v279 = vsub.f32 0.0, %v200
  %v280 = vsub.f32 0.0, %v203
  %v281 = vsub.f32 0.0, %v206
  %v282 = vsub.f32 0.0, %v209
  %v283 = vsub.f32 0.0, %v212
  %v284 = vsub.f32 0.0, %v215
  %v285 = vsub.f32 0.0, %v218
  %v286 = vsub.f32 0.0, %v221
  %v287 = vsub.f32 0.0, %v224
  %v288 = vsub.f32 0.0, %v227
  %v289 = vsub.f32 0.0, %v230
  %v290 = vsub.f32 0.0, %v233
  %v291 = vsub.f32 0.0, %v236
  %v292 = vsub.f32 0.0, %v239
  %v293 = vsub.f32 0.0, %v242
  %v294 = vsub.f32 0.0, %v245
  %v295 = vsub.f32 0.0, %v248
  %v296 = vsub.f32 0.0, %v251
  %v297 = vsub.f32 0.0, %v254
  %v298 = vsub.f32 0.0, %v257
  %v299 = vsub.f32 0.0, %v260
  %v300 = vsub.f32 0.0, %v263
  %v301 = vsub.f32 0.0, %v266
  %v302 = vsub.f32 0.0, %v269
  %v303 = vmul.f32 %v271, 1.442695
  %v304 = vpow.pop %v303
  %v305 = vmul.f32 %v272, 1.442695
  %v306 = vpow.pop %v305
  %v307 = vmul.f32 %v273, 1.442695
  %v308 = vpow.pop %v307
  %v309 = vmul.f32 %v274, 1.442695
  %v310 = vpow.pop %v309
  %v311 = vmul.f32 %v275, 1.442695
  %v312 = vpow.pop %v311
  %v313 = vmul.f32 %v276, 1.442695
  %v314 = vpow.pop %v313
  %v315 = vmul.f32 %v277, 1.442695
  %v316 = vpow.pop %v315
  %v317 = vmul.f32 %v278, 1.442695
  %v318 = vpow.pop %v317
  %v319 = vmul.f32 %v279, 1.442695
  %v320 = vpow.pop %v319
  %v321 = vmul.f32 %v280, 1.442695
  %v322 = vpow.pop %v321
  %v323 = vmul.f32 %v281, 1.442695
  %v324 = vpow.pop %v323
  %v325 = vmul.f32 %v282, 1.442695
  %v326 = vpow.pop %v325
  %v327 = vmul.f32 %v283, 1.442695
  %v328 = vpow.pop %v327
  %v329 = vmul.f32 %v284, 1.442695
  %v330 = vpow.pop %v329
  %v331 = vmul.f32 %v285, 1.442695
  %v332 = vpow.pop %v331
  %v333 = vmul.f32 %v286, 1.442695
  %v334 = vpow.pop %v333
  %v335 = vmul.f32 %v287, 1.442695
  %v336 = vpow.pop %v335
  %v337 = vmul.f32 %v288, 1.442695
  %v338 = vpow.pop %v337
  %v339 = vmul.f32 %v289, 1.442695
  %v340 = vpow.pop %v339
  %v341 = vmul.f32 %v290, 1.442695
  %v342 = vpow.pop %v341
  %v343 = vmul.f32 %v291, 1.442695
  %v344 = vpow.pop %v343
  %v345 = vmul.f32 %v292, 1.442695
  %v346 = vpow.pop %v345
  %v347 = vmul.f32 %v293, 1.442695
  %v348 = vpow.pop %v347
  %v349 = vmul.f32 %v294, 1.442695
  %v350 = vpow.pop %v349
  %v351 = vmul.f32 %v295, 1.442695
  %v352 = vpow.pop %v351
  %v353 = vmul.f32 %v296, 1.442695
  %v354 = vpow.pop %v353
  %v355 = vmul.f32 %v297, 1.442695
  %v356 = vpow.pop %v355
  %v357 = vmul.f32 %v298, 1.442695
  %v358 = vpow.pop %v357
  %v359 = vmul.f32 %v299, 1.442695
  %v360 = vpow.pop %v359
  %v361 = vmul.f32 %v300, 1.442695
  %v362 = vpow.pop %v361
  %v363 = vmul.f32 %v301, 1.442695
  %v364 = vpow.pop %v363
  %v365 = vmul.f32 %v302, 1.442695
  %v366 = vpow.pop %v365
  %v367 = vadd.f32 %v304, 1.0
  %v368 = vadd.f32 %v306, 1.0
  %v369 = vadd.f32 %v308, 1.0
  %v370 = vadd.f32 %v310, 1.0
  %v371 = vadd.f32 %v312, 1.0
  %v372 = vadd.f32 %v314, 1.0
  %v373 = vadd.f32 %v316, 1.0
  %v374 = vadd.f32 %v318, 1.0
  %v375 = vadd.f32 %v320, 1.0
  %v376 = vadd.f32 %v322, 1.0
  %v377 = vadd.f32 %v324, 1.0
  %v378 = vadd.f32 %v326, 1.0
  %v379 = vadd.f32 %v328, 1.0
  %v380 = vadd.f32 %v330, 1.0
  %v381 = vadd.f32 %v332, 1.0
  %v382 = vadd.f32 %v334, 1.0
  %v383 = vadd.f32 %v336, 1.0
  %v384 = vadd.f32 %v338, 1.0
  %v385 = vadd.f32 %v340, 1.0
  %v386 = vadd.f32 %v342, 1.0
  %v387 = vadd.f32 %v344, 1.0
  %v388 = vadd.f32 %v346, 1.0
  %v389 = vadd.f32 %v348, 1.0
  %v390 = vadd.f32 %v350, 1.0
  %v391 = vadd.f32 %v352, 1.0
  %v392 = vadd.f32 %v354, 1.0
  %v393 = vadd.f32 %v356, 1.0
  %v394 = vadd.f32 %v358, 1.0
  %v395 = vadd.f32 %v360, 1.0
  %v396 = vadd.f32 %v362, 1.0
  %v397 = vadd.f32 %v364, 1.0
  %v398 = vadd.f32 %v366, 1.0
  %v399 = vrcp.pop %v367
  %v400 = vrcp.pop %v368
  %v401 = vrcp.pop %v369
  %v402 = vrcp.pop %v370
  %v403 = vrcp.pop %v371
  %v404 = vrcp.pop %v372
  %v405 = vrcp.pop %v373
  %v406 = vrcp.pop %v374
  %v407 = vrcp.pop %v375
  %v408 = vrcp.pop %v376
  %v409 = vrcp.pop %v377
  %v410 = vrcp.pop %v378
  %v411 = vrcp.pop %v379
  %v412 = vrcp.pop %v380
  %v413 = vrcp.pop %v381
  %v414 = vrcp.pop %v382
  %v415 = vrcp.pop %v383
  %v416 = vrcp.pop %v384
  %v417 = vrcp.pop %v385
  %v418 = vrcp.pop %v386
  %v419 = vrcp.pop %v387
  %v420 = vrcp.pop %v388
  %v421 = vrcp.pop %v389
  %v422 = vrcp.pop %v390
  %v423 = vrcp.pop %v391
  %v424 = vrcp.pop %v392
  %v425 = vrcp.pop %v393
  %v426 = vrcp.pop %v394
  %v427 = vrcp.pop %v395
  %v428 = vrcp.pop %v396
  %v429 = vrcp.pop %v397
  %v430 = vrcp.pop %v398
  %v431 = vld [vmem:[%s3] sm:$0xff]
  %v432 = vld [vmem:[%s4] sm:$0xff]
  %434 = vset.pattern.permute.xlu0 0
  %435 = vperm.xlu0 %434, %v432
  %v436 = vpop.permute.xlu0 %435
  %438 = vmatpush.xpose.msra.mxu0 %v414
  %439 = vmatpush.xpose.msra.mxu0 %v413
  %440 = vmatpush.xpose.msra.mxu0 %v412
  %441 = vmatpush.xpose.msra.mxu0 %v411
  %442 = vmatpush.xpose.msra.mxu0 %v410
  %443 = vmatpush.xpose.msra.mxu0 %v409
  %444 = vmatpush.xpose.msra.mxu0 %v408
  %445 = vmatpush.xpose.msra.mxu0 %v407
  %446 = vmatpush.xpose.msra.mxu0 %v406
  %447 = vmatpush.xpose.msra.mxu0 %v405
  %448 = vmatpush.xpose.msra.mxu0 %v404
  %449 = vmatpush.xpose.msra.mxu0 %v403
  %450 = vmatpush.xpose.msra.mxu0 %v402
  %451 = vmatpush.xpose.msra.mxu0 %v401
  %452 = vmatpush.xpose.msra.mxu0 %v400
  %453 = vmatpush.xpose.msra.mxu0 %v399
  %454 = vmatmul.f32.gmra.mxu0 %v431
  %v455 = vpop.f32.mrf.mxu0
  %v456 = vadd.f32 %v436, %v455
  %457 = vdwg.mxu0
  %458 = vmatpush.xpose.msra.mxu0 %v430
  %459 = vmatpush.xpose.msra.mxu0 %v429
  %460 = vmatpush.xpose.msra.mxu0 %v428
  %461 = vmatpush.xpose.msra.mxu0 %v427
  %462 = vmatpush.xpose.msra.mxu0 %v426
  %463 = vmatpush.xpose.msra.mxu0 %v425
  %464 = vmatpush.xpose.msra.mxu0 %v424
  %465 = vmatpush.xpose.msra.mxu0 %v423
  %466 = vmatpush.xpose.msra.mxu0 %v422
  %467 = vmatpush.xpose.msra.mxu0 %v421
  %468 = vmatpush.xpose.msra.mxu0 %v420
  %469 = vmatpush.xpose.msra.mxu0 %v419
  %470 = vmatpush.xpose.msra.mxu0 %v418
  %471 = vmatpush.xpose.msra.mxu0 %v417
  %472 = vmatpush.xpose.msra.mxu0 %v416
  %473 = vmatpush.xpose.msra.mxu0 %v415
  %474 = vmatmul.f32.gmra.mxu0 %v431
  %v475 = vpop.f32.mrf.mxu0
  %v476 = vadd.f32 %v436, %v475
  %477 = vdwg.mxu0
  %478 = vst [vmem:[%s5] sm:$0xff] %v456
  %479 = vst [vmem:[%s5 + $0x8] sm:$0xff] %v476
  // Predicated region
  $region22: #{net_forward.1} parent=0 // pred_check
    _
  $region23: #{net_forward.1} parent=0 // pred_check_branch
    %481 = sbr.rel (0) target = $region25
  $region24: #{net_forward.1} parent=0 // pred_region
    _
  $region25: #{net_forward.1} parent=0 // pred_fallthru
    _
  // Predicated region
  $region26: #{net_forward.1} parent=0 // pred_check
    _
  $region27: #{net_forward.1} parent=0 // pred_check_branch
    %483 = sbr.rel (0) target = $region29
  $region28: #{net_forward.1} parent=0 // pred_region
    _
  $region29: #{net_forward.1} parent=0 // pred_fallthru
    _

</llo_original>
